<compile_context>
chip_gen: v7x
topology: tpu7x:2x2x1
jax: 0.10.0
libtpu: 0.0.40
codegen_flags: <defaults>
</compile_context>

<pallas_src>
import functools

import jax
import jax.numpy as jnp
from jax.experimental import pallas as pl
from jax.experimental.pallas import tpu as pltpu


def _round_up(x, m):
    return ((x + m - 1) // m) * m


def _physical_vmem_bytes():
    try:
        return int(pltpu.get_tpu_info().vmem_capacity_bytes)
    except Exception:
        return 64 * 1024 * 1024  # conservative (v7x per-TC physical VMEM)


def _pick_vmem_limit(prepared, TB, single_buffer):
    """Size the scoped VMEM limit from the actual tiles, cap at ~85% physical."""
    nbytes = lambda a: int(a.size) * a.dtype.itemsize
    w = sum(nbytes(prepared[k]) for k in ("w1", "b1", "w2", "b2", "wh", "bh"))
    w *= 1 if single_buffer else 2                     # weight buffers
    obs_dim, hidden, HW = prepared["obs_dim"], prepared["hidden"], prepared["HW"]
    stream = 2 * TB * obs_dim * 4 + 2 * TB * HW * 4    # double-buffered obs/out tiles
    work = 2 * TB * hidden * 4 + TB * hidden * 2 + 2 * TB * HW * 4  # h(f32), casts, head
    limit = int((w + stream + work) * 1.5) + (8 << 20)  # headroom for Mosaic scratch
    limit = max(limit, 32 << 20)                        # never below the default scoped limit
    return min(limit, int(_physical_vmem_bytes() * 0.85))


# ----------------------------------------------------------------------------
# Pallas kernel: 2-layer ReLU MLP + one fused head matmul + clamp/tanh/exp,
# writing a single lane-dense (TB, HW) output slab per batch tile.
# ----------------------------------------------------------------------------
def mdn_kernel(obs_ref, w1_ref, b1_ref, w2_ref, b2_ref, wh_ref, bh_ref,
               out_ref, *, ka, seg):
    x = obs_ref[...]

    # hidden = ReLU(obs @ W1 + b1)   (MXU, f32 accumulate; elementwise in f32)
    h = jnp.dot(x.astype(w1_ref.dtype), w1_ref[...],
                preferred_element_type=jnp.float32)
    h = jnp.maximum(h + b1_ref[...], 0.0)

    # hidden = ReLU(hidden @ W2 + b2)
    h = jnp.dot(h.astype(w2_ref.dtype), w2_ref[...],
                preferred_element_type=jnp.float32)
    h = jnp.maximum(h + b2_ref[...], 0.0)

    # fused heads (head weights stay f32 — tiny, and std goes through exp)
    head = jnp.dot(h.astype(wh_ref.dtype), wh_ref[...],
                   preferred_element_type=jnp.float32) + bh_ref[...]

    if seg:
        # 128-lane-aligned split layout: static lane-dense slices, tanh only on
        # the mean slab and exp only on the std slab (no iota / masks / where).
        out_ref[:, :seg] = jnp.tanh(jnp.clip(head[:, :seg], -9.0, 9.0))
        out_ref[:, seg:2 * seg] = jnp.exp(jnp.clip(head[:, seg:2 * seg], 0.007, 7.5))
        out_ref[:, 2 * seg:] = head[:, 2 * seg:]
    else:
        # Small-ka layout: [0,ka)=mean, [ka,2ka)=std, rest logits/pad. Lane mask
        # keeps the store lane-dense while ka is not 128-aligned.
        col = jax.lax.broadcasted_iota(jnp.int32, head.shape, 1)
        mean_t = jnp.tanh(jnp.clip(head, -9.0, 9.0))
        std_t = jnp.exp(jnp.clip(head, 0.007, 7.5))
        out_ref[...] = jnp.where(col < ka, mean_t,
                                 jnp.where(col < 2 * ka, std_t, head))


# ----------------------------------------------------------------------------
# One-time parameter preparation (hoisted out of the per-call forward path)
# ----------------------------------------------------------------------------
def prepare_params(params, *, act_dim, n_components, use_bf16=True,
                   split_heads=None):
    """Pack [wm|ws|wp] into one lane-dense head matrix, optionally pad hidden
    to a multiple of 128 and cast the big weights to bf16. Call ONCE."""
    w1, b1 = params["w1"], params["b1"]
    w2, b2 = params["w2"], params["b2"]
    wm, bm = params["wm"], params["bm"]
    ws, bs = params["ws"], params["bs"]
    wp, bp = params["wp"], params["bp"]
    obs_dim, hidden = w1.shape
    ka = act_dim * n_components
    K = n_components
    f32 = jnp.float32

    # Pad `hidden` to a multiple of 128 so both hidden matmuls use full MXU
    # tiles (zero rows/cols are mathematically inert through ReLU/heads).
    hidden_p = _round_up(hidden, 128) if hidden > 128 else hidden
    if hidden_p != hidden:
        ph = hidden_p - hidden
        w1 = jnp.pad(w1, ((0, 0), (0, ph)))
        b1 = jnp.pad(b1, ((0, 0), (0, ph)))
        w2 = jnp.pad(w2, ((0, ph), (0, ph)))
        b2 = jnp.pad(b2, ((0, 0), (0, ph)))
        wm = jnp.pad(wm, ((0, ph), (0, 0)))
        ws = jnp.pad(ws, ((0, ph), (0, 0)))
        wp = jnp.pad(wp, ((0, ph), (0, 0)))

    if split_heads is None:
        split_heads = ka >= 128  # extra 128-lane padding only pays off for big heads

    if split_heads:
        seg = _round_up(ka, 128)
        HW = 2 * seg + _round_up(K, 128)
        zc = lambda n: jnp.zeros((hidden_p, n), f32)
        zb = lambda n: jnp.zeros((1, n), f32)
        wh = jnp.concatenate([wm, zc(seg - ka), ws, zc(seg - ka),
                              wp, zc(HW - 2 * seg - K)], axis=1)
        bh = jnp.concatenate([bm, zb(seg - ka), bs, zb(seg - ka),
                              bp, zb(HW - 2 * seg - K)], axis=1)
    else:
        seg = 0
        hw_raw = 2 * ka + K
        HW = max(128, _round_up(hw_raw, 128))
        wh = jnp.concatenate([wm, ws, wp,
                              jnp.zeros((hidden_p, HW - hw_raw), f32)], axis=1)
        bh = jnp.concatenate([bm, bs, bp,
                              jnp.zeros((1, HW - hw_raw), f32)], axis=1)

    if use_bf16:
        # bf16 MXU inputs for the two big matmuls (native fast path on v6e/v7x,
        # ~half the MXU passes on v5e). Accumulation, biases, elementwise and
        # the tiny head weight stay f32.
        w1 = w1.astype(jnp.bfloat16)
        w2 = w2.astype(jnp.bfloat16)

    return {
        "w1": w1, "b1": b1, "w2": w2, "b2": b2, "wh": wh, "bh": bh,
        "obs_dim": obs_dim, "hidden": hidden_p, "ka": ka,
        "n_components": K, "act_dim": act_dim, "HW": HW, "seg": seg,
    }


# ----------------------------------------------------------------------------
# Forward wrapper
# ----------------------------------------------------------------------------
def mdn_forward(obs, prepared, *, block_b=1024):
    """Returns (mean, std, logits); mean/std shaped (B, n_components, act_dim)."""
    B, obs_dim_in = obs.shape
    obs_dim = prepared["obs_dim"]
    hidden = prepared["hidden"]
    HW = prepared["HW"]
    ka = prepared["ka"]
    seg = prepared["seg"]
    K = prepared["n_components"]
    act_dim = prepared["act_dim"]
    assert obs_dim_in == obs_dim

    # Batch tiling: TB rows per grid step (multiple of 8 sublanes).
    TB = min(_round_up(B, 8), max(8, (block_b // 8) * 8))
    if B >= 16:
        # Keep >=2 grid steps so v7x's 2nd TensorCore gets a "parallel" step;
        # costs at most one extra ~0.35us step on single-core v5e/v6e.
        TB = min(TB, _round_up(pl.cdiv(B, 2), 8))
    B_pad = _round_up(max(B, 1), TB)
    obs_p = jnp.pad(obs, ((0, B_pad - B), (0, 0))) if B_pad != B else obs
    grid = (B_pad // TB,)

    kernel = functools.partial(mdn_kernel, ka=ka, seg=seg)
    const = lambda i: (0, 0)

    def run(single_buffer):
        # Grid-invariant weights/biases: constant index_map (VMEM resident);
        # single-buffer them so the second pipeline buffer isn't wasted.
        wmode = {"pipeline_mode": pl.Buffered(1)} if single_buffer else {}
        return pl.pallas_call(
            kernel,
            out_shape=jax.ShapeDtypeStruct((B_pad, HW), jnp.float32),
            grid=grid,
            in_specs=[
                pl.BlockSpec((TB, obs_dim), lambda i: (i, 0)),         # obs tile
                pl.BlockSpec((obs_dim, hidden), const, **wmode),       # W1
                pl.BlockSpec((1, hidden), const, **wmode),             # b1
                pl.BlockSpec((hidden, hidden), const, **wmode),        # W2
                pl.BlockSpec((1, hidden), const, **wmode),             # b2
                pl.BlockSpec((hidden, HW), const, **wmode),            # fused head W
                pl.BlockSpec((1, HW), const, **wmode),                 # fused head b
            ],
            out_specs=pl.BlockSpec((TB, HW), lambda i: (i, 0)),
            compiler_params=pltpu.CompilerParams(
                dimension_semantics=("parallel",),  # batch tiles independent
                vmem_limit_bytes=_pick_vmem_limit(prepared, TB, single_buffer),
            ),
        )(obs_p, prepared["w1"], prepared["b1"], prepared["w2"],
          prepared["b2"], prepared["wh"], prepared["bh"])

    try:
        out = run(True)
    except Exception:
        # Fallback if this runtime rejects pipeline_mode on BlockSpec.
        out = run(False)

    out = out[:B]
    if seg:
        mean = out[:, :ka]
        std = out[:, seg:seg + ka]
        logits = out[:, 2 * seg:2 * seg + K]
    else:
        mean = out[:, :ka]
        std = out[:, ka:2 * ka]
        logits = out[:, 2 * ka:2 * ka + K]
    return (mean.reshape(B, K, act_dim), std.reshape(B, K, act_dim), logits)


# ----------------------------------------------------------------------------
# Pure-JAX reference (for correctness check), matching the PyTorch forward.
# ----------------------------------------------------------------------------
def mdn_forward_ref(obs, params, *, act_dim, n_components):
    h = jnp.maximum(obs @ params["w1"] + params["b1"], 0.0)
    h = jnp.maximum(h @ params["w2"] + params["b2"], 0.0)
    mean = h @ params["wm"] + params["bm"]
    std = h @ params["ws"] + params["bs"]
    logits = h @ params["wp"] + params["bp"]
    mean = jnp.tanh(jnp.clip(mean, -9.0, 9.0))
    std = jnp.exp(jnp.clip(std, 0.007, 7.5))
    B = obs.shape[0]
    return (mean.reshape(B, n_components, act_dim),
            std.reshape(B, n_components, act_dim),
            logits)


# ----------------------------------------------------------------------------
# Deterministic parameter init (xavier-uniform with ReLU gain; biases 0)
# ----------------------------------------------------------------------------
def init_params(key, obs_dim, act_dim, hidden_size, n_components):
    gain = jnp.sqrt(2.0)  # nn.init.calculate_gain('relu')

    def xavier(k, fan_in, fan_out):
        limit = gain * jnp.sqrt(6.0 / (fan_in + fan_out))
        return jax.random.uniform(k, (fan_in, fan_out), jnp.float32, -limit, limit)

    ks = jax.random.split(key, 5)
    ka = act_dim * n_components
    return {
        "w1": xavier(ks[0], obs_dim, hidden_size),
        "b1": jnp.zeros((1, hidden_size), jnp.float32),
        "w2": xavier(ks[1], hidden_size, hidden_size),
        "b2": jnp.zeros((1, hidden_size), jnp.float32),
        "wm": xavier(ks[2], hidden_size, ka),
        "bm": jnp.zeros((1, ka), jnp.float32),
        "ws": xavier(ks[3], hidden_size, ka),
        "bs": jnp.zeros((1, ka), jnp.float32),
        "wp": xavier(ks[4], hidden_size, n_components),
        "bp": jnp.zeros((1, n_components), jnp.float32),
    }


if __name__ == "__main__":
    key = jax.random.PRNGKey(0)
    (k_obs, k_par, k_obs2, k_par3, k_obs3, k_par4, k_obs4) = jax.random.split(key, 7)

    # --- Case 1: tiny shapes, single-slab head, f32 strict + bf16 loose -----
    B, OBS_DIM, ACT_DIM, HIDDEN, K = 8, 16, 4, 32, 2
    obs = jax.random.normal(k_obs, (B, OBS_DIM), jnp.float32)
    params = init_params(k_par, OBS_DIM, ACT_DIM, HIDDEN, K)
    mean_r, std_r, logits_r = mdn_forward_ref(obs, params, act_dim=ACT_DIM,
                                              n_components=K)

    prep_f32 = prepare_params(params, act_dim=ACT_DIM, n_components=K,
                              use_bf16=False)
    mean, std, logits = mdn_forward(obs, prep_f32)
    jax.block_until_ready((mean, std, logits))
    assert mean.shape == (B, K, ACT_DIM)
    assert std.shape == (B, K, ACT_DIM)
    assert logits.shape == (B, K)
    assert jnp.allclose(mean, mean_r, atol=1e-4, rtol=1e-4)
    assert jnp.allclose(std, std_r, atol=1e-3, rtol=1e-4)
    assert jnp.allclose(logits, logits_r, atol=1e-4, rtol=1e-4)

    # bf16 default fast path (loose check)
    prep_bf16 = prepare_params(params, act_dim=ACT_DIM, n_components=K)
    mb, sb, lb = mdn_forward(obs, prep_bf16)
    jax.block_until_ready((mb, sb, lb))
    assert bool(jnp.all(jnp.isfinite(mb)))
    assert bool(jnp.all(jnp.isfinite(sb)))
    assert bool(jnp.all(jnp.isfinite(lb)))
    assert jnp.allclose(mb, mean_r, atol=0.05, rtol=0.1)
    assert jnp.allclose(sb, std_r, atol=0.02, rtol=0.15)
    assert jnp.allclose(lb, logits_r, atol=0.05, rtol=0.1)

    # --- Case 2: gridded path (B not a multiple of the tile), f32 strict ----
    B2 = 37
    obs2 = jax.random.normal(k_obs2, (B2, OBS_DIM), jnp.float32)
    m2, s2, l2 = mdn_forward(obs2, prep_f32, block_b=16)
    m2r, s2r, l2r = mdn_forward_ref(obs2, params, act_dim=ACT_DIM, n_components=K)
    assert m2.shape == (B2, K, ACT_DIM)
    assert jnp.allclose(m2, m2r, atol=1e-4, rtol=1e-4)
    assert jnp.allclose(s2, s2r, atol=1e-3, rtol=1e-4)
    assert jnp.allclose(l2, l2r, atol=1e-4, rtol=1e-4)

    # --- Case 3: big head (ka >= 128) -> 128-aligned split layout, f32 ------
    params3 = init_params(k_par3, 16, 32, 128, 4)   # ka = 128
    obs3 = jax.random.normal(k_obs3, (16, 16), jnp.float32)
    prep3 = prepare_params(params3, act_dim=32, n_components=4, use_bf16=False)
    assert prep3["seg"] == 128
    m3, s3, l3 = mdn_forward(obs3, prep3)
    m3r, s3r, l3r = mdn_forward_ref(obs3, params3, act_dim=32, n_components=4)
    assert m3.shape == (16, 4, 32) and l3.shape == (16, 4)
    assert jnp.allclose(m3, m3r, atol=1e-4, rtol=1e-4)
    assert jnp.allclose(s3, s3r, atol=1e-3, rtol=1e-4)
    assert jnp.allclose(l3, l3r, atol=1e-3, rtol=1e-4)

    # --- Case 4: non-128-aligned hidden (padded in prepare_params), f32 -----
    params4 = init_params(k_par4, 16, 4, 300, 2)
    obs4 = jax.random.normal(k_obs4, (8, 16), jnp.float32)
    prep4 = prepare_params(params4, act_dim=4, n_components=2, use_bf16=False)
    assert prep4["hidden"] == 384
    m4, s4, l4 = mdn_forward(obs4, prep4)
    m4r, s4r, l4r = mdn_forward_ref(obs4, params4, act_dim=4, n_components=2)
    assert jnp.allclose(m4, m4r, atol=1e-4, rtol=1e-4)
    assert jnp.allclose(s4, s4r, atol=1e-3, rtol=1e-4)
    assert jnp.allclose(l4, l4r, atol=1e-3, rtol=1e-4)

    # TODO(synk): torch.distributions (MixtureSameFamily / Categorical /
    # Normal / Independent) objects have no Pallas equivalent; the kernel
    # emits their parameters (mean, std, logits) which fully define them.

    print("KERNEL_OK")
</pallas_src>

<mosaic_0001>
module attributes {stable_mosaic.version = 11 : i64} {
  func.func @mdn_kernel(%arg0: i32, %arg1: memref<8x16xf32, #tpu.memory_space<vmem>>, %arg2: memref<16x32xf32, #tpu.memory_space<vmem>>, %arg3: memref<1x32xf32, #tpu.memory_space<vmem>>, %arg4: memref<32x32xf32, #tpu.memory_space<vmem>>, %arg5: memref<1x32xf32, #tpu.memory_space<vmem>>, %arg6: memref<32x128xf32, #tpu.memory_space<vmem>>, %arg7: memref<1x128xf32, #tpu.memory_space<vmem>>, %arg8: memref<8x128xf32, #tpu.memory_space<vmem>>) attributes {dimension_semantics = [#tpu.dimension_semantics<parallel>], iteration_bounds = array<i64: 1>, scalar_prefetch = 0 : i64, scratch_operands = 0 : i64, tpu.core_type = #tpu.core_type<tc>, window_params = [{transform_indices = @transform_0, window_bounds = array<i64: 8, 16>}, {pipeline_mode = #tpu.pipeline_mode<synchronous>, transform_indices = @transform_1, window_bounds = array<i64: 16, 32>}, {pipeline_mode = #tpu.pipeline_mode<synchronous>, transform_indices = @transform_2, window_bounds = array<i64: 1, 32>}, {pipeline_mode = #tpu.pipeline_mode<synchronous>, transform_indices = @transform_3, window_bounds = array<i64: 32, 32>}, {pipeline_mode = #tpu.pipeline_mode<synchronous>, transform_indices = @transform_4, window_bounds = array<i64: 1, 32>}, {pipeline_mode = #tpu.pipeline_mode<synchronous>, transform_indices = @transform_5, window_bounds = array<i64: 32, 128>}, {pipeline_mode = #tpu.pipeline_mode<synchronous>, transform_indices = @transform_6, window_bounds = array<i64: 1, 128>}, {transform_indices = @transform_7, window_bounds = array<i64: 8, 128>}]} {
    %c0 = arith.constant 0 : index
    %c0_0 = arith.constant 0 : index
    %0 = vector.load %arg1[%c0, %c0_0] : memref<8x16xf32, #tpu.memory_space<vmem>>, vector<8x16xf32>
    %c0_1 = arith.constant 0 : index
    %c0_2 = arith.constant 0 : index
    %1 = vector.load %arg2[%c0_1, %c0_2] : memref<16x32xf32, #tpu.memory_space<vmem>>, vector<16x32xf32>
    %cst = arith.constant dense<0.000000e+00> : vector<8x32xf32>
    %2 = tpu.matmul %0, %1, %cst {dimension_numbers = #tpu.dot_dimension_numbers<[1], [0], [0], [1], [0, 0, 1, 1], [], []>} : vector<8x16xf32>, vector<16x32xf32>, vector<8x32xf32> -> vector<8x32xf32>
    %c0_3 = arith.constant 0 : index
    %c0_4 = arith.constant 0 : index
    %3 = vector.load %arg3[%c0_3, %c0_4] : memref<1x32xf32, #tpu.memory_space<vmem>>, vector<1x32xf32>
    %4 = vector.broadcast %3 : vector<1x32xf32> to vector<8x32xf32>
    %5 = arith.addf %2, %4 : vector<8x32xf32>
    %cst_5 = arith.constant 0.000000e+00 : f32
    %6 = vector.broadcast %cst_5 : f32 to vector<8x32xf32>
    %7 = arith.maximumf %5, %6 : vector<8x32xf32>
    %c0_6 = arith.constant 0 : index
    %c0_7 = arith.constant 0 : index
    %8 = vector.load %arg4[%c0_6, %c0_7] : memref<32x32xf32, #tpu.memory_space<vmem>>, vector<32x32xf32>
    %cst_8 = arith.constant dense<0.000000e+00> : vector<8x32xf32>
    %9 = tpu.matmul %7, %8, %cst_8 {dimension_numbers = #tpu.dot_dimension_numbers<[1], [0], [0], [1], [0, 0, 1, 1], [], []>} : vector<8x32xf32>, vector<32x32xf32>, vector<8x32xf32> -> vector<8x32xf32>
    %c0_9 = arith.constant 0 : index
    %c0_10 = arith.constant 0 : index
    %10 = vector.load %arg5[%c0_9, %c0_10] : memref<1x32xf32, #tpu.memory_space<vmem>>, vector<1x32xf32>
    %11 = vector.broadcast %10 : vector<1x32xf32> to vector<8x32xf32>
    %12 = arith.addf %9, %11 : vector<8x32xf32>
    %cst_11 = arith.constant 0.000000e+00 : f32
    %13 = vector.broadcast %cst_11 : f32 to vector<8x32xf32>
    %14 = arith.maximumf %12, %13 : vector<8x32xf32>
    %c0_12 = arith.constant 0 : index
    %c0_13 = arith.constant 0 : index
    %15 = vector.load %arg6[%c0_12, %c0_13] : memref<32x128xf32, #tpu.memory_space<vmem>>, vector<32x128xf32>
    %cst_14 = arith.constant dense<0.000000e+00> : vector<8x128xf32>
    %16 = tpu.matmul %14, %15, %cst_14 {dimension_numbers = #tpu.dot_dimension_numbers<[1], [0], [0], [1], [0, 0, 1, 1], [], []>} : vector<8x32xf32>, vector<32x128xf32>, vector<8x128xf32> -> vector<8x128xf32>
    %c0_15 = arith.constant 0 : index
    %c0_16 = arith.constant 0 : index
    %17 = vector.load %arg7[%c0_15, %c0_16] : memref<1x128xf32, #tpu.memory_space<vmem>>, vector<1x128xf32>
    %18 = vector.broadcast %17 : vector<1x128xf32> to vector<8x128xf32>
    %19 = arith.addf %16, %18 : vector<8x128xf32>
    %20 = tpu.iota {dimensions = array<i32: 1>} : vector<8x128xi32>
    %cst_17 = arith.constant -9.000000e+00 : f32
    %cst_18 = arith.constant 9.000000e+00 : f32
    %21 = vector.broadcast %cst_17 : f32 to vector<8x128xf32>
    %22 = arith.maximumf %21, %19 : vector<8x128xf32>
    %23 = vector.broadcast %cst_18 : f32 to vector<8x128xf32>
    %24 = arith.minimumf %23, %22 : vector<8x128xf32>
    %25 = math.tanh %24 : vector<8x128xf32>
    %cst_19 = arith.constant 7.000000e-03 : f32
    %cst_20 = arith.constant 7.500000e+00 : f32
    %26 = vector.broadcast %cst_19 : f32 to vector<8x128xf32>
    %27 = arith.maximumf %26, %19 : vector<8x128xf32>
    %28 = vector.broadcast %cst_20 : f32 to vector<8x128xf32>
    %29 = arith.minimumf %28, %27 : vector<8x128xf32>
    %30 = math.exp %29 : vector<8x128xf32>
    %c8_i32 = arith.constant 8 : i32
    %31 = vector.broadcast %c8_i32 : i32 to vector<8x128xi32>
    %32 = arith.cmpi slt, %20, %31 : vector<8x128xi32>
    %c16_i32 = arith.constant 16 : i32
    %33 = vector.broadcast %c16_i32 : i32 to vector<8x128xi32>
    %34 = arith.cmpi slt, %20, %33 : vector<8x128xi32>
    %35 = arith.select %34, %30, %19 : vector<8x128xi1>, vector<8x128xf32>
    %36 = arith.select %32, %25, %35 : vector<8x128xi1>, vector<8x128xf32>
    %c0_21 = arith.constant 0 : index
    %c0_22 = arith.constant 0 : index
    %37 = vector.load %arg8[%c0_21, %c0_22] : memref<8x128xf32, #tpu.memory_space<vmem>>, vector<8x128xf32>
    tpu.vector_store %arg8[%c0_21, %c0_22], %36 {strides = array<i32>} : memref<8x128xf32, #tpu.memory_space<vmem>>, vector<8x128xf32>,
    return
  }
  func.func @transform_0(%arg0: i32) -> (i32, i32) {
    %c0_i32 = arith.constant 0 : i32
    %c0_i32_0 = arith.constant 0 : i32
    return %arg0, %c0_i32 : i32, i32
  }
  func.func @transform_1(%arg0: i32) -> (i32, i32) {
    %c0_i32 = arith.constant 0 : i32
    %c0_i32_0 = arith.constant 0 : i32
    %c0_i32_1 = arith.constant 0 : i32
    return %c0_i32, %c0_i32_0 : i32, i32
  }
  func.func @transform_2(%arg0: i32) -> (i32, i32) {
    %c0_i32 = arith.constant 0 : i32
    %c0_i32_0 = arith.constant 0 : i32
    %c0_i32_1 = arith.constant 0 : i32
    return %c0_i32, %c0_i32_0 : i32, i32
  }
  func.func @transform_3(%arg0: i32) -> (i32, i32) {
    %c0_i32 = arith.constant 0 : i32
    %c0_i32_0 = arith.constant 0 : i32
    %c0_i32_1 = arith.constant 0 : i32
    return %c0_i32, %c0_i32_0 : i32, i32
  }
  func.func @transform_4(%arg0: i32) -> (i32, i32) {
    %c0_i32 = arith.constant 0 : i32
    %c0_i32_0 = arith.constant 0 : i32
    %c0_i32_1 = arith.constant 0 : i32
    return %c0_i32, %c0_i32_0 : i32, i32
  }
  func.func @transform_5(%arg0: i32) -> (i32, i32) {
    %c0_i32 = arith.constant 0 : i32
    %c0_i32_0 = arith.constant 0 : i32
    %c0_i32_1 = arith.constant 0 : i32
    return %c0_i32, %c0_i32_0 : i32, i32
  }
  func.func @transform_6(%arg0: i32) -> (i32, i32) {
    %c0_i32 = arith.constant 0 : i32
    %c0_i32_0 = arith.constant 0 : i32
    %c0_i32_1 = arith.constant 0 : i32
    return %c0_i32, %c0_i32_0 : i32, i32
  }
  func.func @transform_7(%arg0: i32) -> (i32, i32) {
    %c0_i32 = arith.constant 0 : i32
    %c0_i32_0 = arith.constant 0 : i32
    return %arg0, %c0_i32 : i32, i32
  }
}

module attributes {stable_mosaic.version = 11 : i64} {
  func.func @mdn_kernel(%arg0: i32, %arg1: memref<8x16xf32, #tpu.memory_space<vmem>>, %arg2: memref<16x32xf32, #tpu.memory_space<vmem>>, %arg3: memref<1x32xf32, #tpu.memory_space<vmem>>, %arg4: memref<32x32xf32, #tpu.memory_space<vmem>>, %arg5: memref<1x32xf32, #tpu.memory_space<vmem>>, %arg6: memref<32x128xf32, #tpu.memory_space<vmem>>, %arg7: memref<1x128xf32, #tpu.memory_space<vmem>>, %arg8: memref<8x128xf32, #tpu.memory_space<vmem>>) attributes {dimension_semantics = [#tpu.dimension_semantics<parallel>], iteration_bounds = array<i64: 1>, scalar_prefetch = 0 : i64, scratch_operands = 0 : i64, tpu.core_type = #tpu.core_type<tc>, window_params = [{transform_indices = @transform_0, window_bounds = array<i64: 8, 16>}, {pipeline_mode = #tpu.pipeline_mode<synchronous>, transform_indices = @transform_1, window_bounds = array<i64: 16, 32>}, {pipeline_mode = #tpu.pipeline_mode<synchronous>, transform_indices = @transform_2, window_bounds = array<i64: 1, 32>}, {pipeline_mode = #tpu.pipeline_mode<synchronous>, transform_indices = @transform_3, window_bounds = array<i64: 32, 32>}, {pipeline_mode = #tpu.pipeline_mode<synchronous>, transform_indices = @transform_4, window_bounds = array<i64: 1, 32>}, {pipeline_mode = #tpu.pipeline_mode<synchronous>, transform_indices = @transform_5, window_bounds = array<i64: 32, 128>}, {pipeline_mode = #tpu.pipeline_mode<synchronous>, transform_indices = @transform_6, window_bounds = array<i64: 1, 128>}, {transform_indices = @transform_7, window_bounds = array<i64: 8, 128>}]} {
    %c0 = arith.constant 0 : index
    %c0_0 = arith.constant 0 : index
    %0 = vector.load %arg1[%c0, %c0_0] : memref<8x16xf32, #tpu.memory_space<vmem>>, vector<8x16xf32>
    %c0_1 = arith.constant 0 : index
    %c0_2 = arith.constant 0 : index
    %1 = vector.load %arg2[%c0_1, %c0_2] : memref<16x32xf32, #tpu.memory_space<vmem>>, vector<16x32xf32>
    %cst = arith.constant dense<0.000000e+00> : vector<8x32xf32>
    %2 = tpu.matmul %0, %1, %cst {dimension_numbers = #tpu.dot_dimension_numbers<[1], [0], [0], [1], [0, 0, 1, 1], [], []>} : vector<8x16xf32>, vector<16x32xf32>, vector<8x32xf32> -> vector<8x32xf32>
    %c0_3 = arith.constant 0 : index
    %c0_4 = arith.constant 0 : index
    %3 = vector.load %arg3[%c0_3, %c0_4] : memref<1x32xf32, #tpu.memory_space<vmem>>, vector<1x32xf32>
    %4 = vector.broadcast %3 : vector<1x32xf32> to vector<8x32xf32>
    %5 = arith.addf %2, %4 : vector<8x32xf32>
    %cst_5 = arith.constant 0.000000e+00 : f32
    %6 = vector.broadcast %cst_5 : f32 to vector<8x32xf32>
    %7 = arith.maximumf %5, %6 : vector<8x32xf32>
    %c0_6 = arith.constant 0 : index
    %c0_7 = arith.constant 0 : index
    %8 = vector.load %arg4[%c0_6, %c0_7] : memref<32x32xf32, #tpu.memory_space<vmem>>, vector<32x32xf32>
    %cst_8 = arith.constant dense<0.000000e+00> : vector<8x32xf32>
    %9 = tpu.matmul %7, %8, %cst_8 {dimension_numbers = #tpu.dot_dimension_numbers<[1], [0], [0], [1], [0, 0, 1, 1], [], []>} : vector<8x32xf32>, vector<32x32xf32>, vector<8x32xf32> -> vector<8x32xf32>
    %c0_9 = arith.constant 0 : index
    %c0_10 = arith.constant 0 : index
    %10 = vector.load %arg5[%c0_9, %c0_10] : memref<1x32xf32, #tpu.memory_space<vmem>>, vector<1x32xf32>
    %11 = vector.broadcast %10 : vector<1x32xf32> to vector<8x32xf32>
    %12 = arith.addf %9, %11 : vector<8x32xf32>
    %cst_11 = arith.constant 0.000000e+00 : f32
    %13 = vector.broadcast %cst_11 : f32 to vector<8x32xf32>
    %14 = arith.maximumf %12, %13 : vector<8x32xf32>
    %c0_12 = arith.constant 0 : index
    %c0_13 = arith.constant 0 : index
    %15 = vector.load %arg6[%c0_12, %c0_13] : memref<32x128xf32, #tpu.memory_space<vmem>>, vector<32x128xf32>
    %cst_14 = arith.constant dense<0.000000e+00> : vector<8x128xf32>
    %16 = tpu.matmul %14, %15, %cst_14 {dimension_numbers = #tpu.dot_dimension_numbers<[1], [0], [0], [1], [0, 0, 1, 1], [], []>} : vector<8x32xf32>, vector<32x128xf32>, vector<8x128xf32> -> vector<8x128xf32>
    %c0_15 = arith.constant 0 : index
    %c0_16 = arith.constant 0 : index
    %17 = vector.load %arg7[%c0_15, %c0_16] : memref<1x128xf32, #tpu.memory_space<vmem>>, vector<1x128xf32>
    %18 = vector.broadcast %17 : vector<1x128xf32> to vector<8x128xf32>
    %19 = arith.addf %16, %18 : vector<8x128xf32>
    %20 = tpu.iota {dimensions = array<i32: 1>} : vector<8x128xi32>
    %cst_17 = arith.constant -9.000000e+00 : f32
    %cst_18 = arith.constant 9.000000e+00 : f32
    %21 = vector.broadcast %cst_17 : f32 to vector<8x128xf32>
    %22 = arith.maximumf %21, %19 : vector<8x128xf32>
    %23 = vector.broadcast %cst_18 : f32 to vector<8x128xf32>
    %24 = arith.minimumf %23, %22 : vector<8x128xf32>
    %25 = math.tanh %24 : vector<8x128xf32>
    %cst_19 = arith.constant 7.000000e-03 : f32
    %cst_20 = arith.constant 7.500000e+00 : f32
    %26 = vector.broadcast %cst_19 : f32 to vector<8x128xf32>
    %27 = arith.maximumf %26, %19 : vector<8x128xf32>
    %28 = vector.broadcast %cst_20 : f32 to vector<8x128xf32>
    %29 = arith.minimumf %28, %27 : vector<8x128xf32>
    %30 = math.exp %29 : vector<8x128xf32>
    %c8_i32 = arith.constant 8 : i32
    %31 = vector.broadcast %c8_i32 : i32 to vector<8x128xi32>
    %32 = arith.cmpi slt, %20, %31 : vector<8x128xi32>
    %c16_i32 = arith.constant 16 : i32
    %33 = vector.broadcast %c16_i32 : i32 to vector<8x128xi32>
    %34 = arith.cmpi slt, %20, %33 : vector<8x128xi32>
    %35 = arith.select %34, %30, %19 : vector<8x128xi1>, vector<8x128xf32>
    %36 = arith.select %32, %25, %35 : vector<8x128xi1>, vector<8x128xf32>
    %c0_21 = arith.constant 0 : index
    %c0_22 = arith.constant 0 : index
    %37 = vector.load %arg8[%c0_21, %c0_22] : memref<8x128xf32, #tpu.memory_space<vmem>>, vector<8x128xf32>
    tpu.vector_store %arg8[%c0_21, %c0_22], %36 {strides = array<i32>} : memref<8x128xf32, #tpu.memory_space<vmem>>, vector<8x128xf32>,
    return
  }
  func.func @transform_0(%arg0: i32) -> (i32, i32) {
    %c0_i32 = arith.constant 0 : i32
    %c0_i32_0 = arith.constant 0 : i32
    return %arg0, %c0_i32 : i32, i32
  }
  func.func @transform_1(%arg0: i32) -> (i32, i32) {
    %c0_i32 = arith.constant 0 : i32
    %c0_i32_0 = arith.constant 0 : i32
    %c0_i32_1 = arith.constant 0 : i32
    return %c0_i32, %c0_i32_0 : i32, i32
  }
  func.func @transform_2(%arg0: i32) -> (i32, i32) {
    %c0_i32 = arith.constant 0 : i32
    %c0_i32_0 = arith.constant 0 : i32
    %c0_i32_1 = arith.constant 0 : i32
    return %c0_i32, %c0_i32_0 : i32, i32
  }
  func.func @transform_3(%arg0: i32) -> (i32, i32) {
    %c0_i32 = arith.constant 0 : i32
    %c0_i32_0 = arith.constant 0 : i32
    %c0_i32_1 = arith.constant 0 : i32
    return %c0_i32, %c0_i32_0 : i32, i32
  }
  func.func @transform_4(%arg0: i32) -> (i32, i32) {
    %c0_i32 = arith.constant 0 : i32
    %c0_i32_0 = arith.constant 0 : i32
    %c0_i32_1 = arith.constant 0 : i32
    return %c0_i32, %c0_i32_0 : i32, i32
  }
  func.func @transform_5(%arg0: i32) -> (i32, i32) {
    %c0_i32 = arith.constant 0 : i32
    %c0_i32_0 = arith.constant 0 : i32
    %c0_i32_1 = arith.constant 0 : i32
    return %c0_i32, %c0_i32_0 : i32, i32
  }
  func.func @transform_6(%arg0: i32) -> (i32, i32) {
    %c0_i32 = arith.constant 0 : i32
    %c0_i32_0 = arith.constant 0 : i32
    %c0_i32_1 = arith.constant 0 : i32
    return %c0_i32, %c0_i32_0 : i32, i32
  }
  func.func @transform_7(%arg0: i32) -> (i32, i32) {
    %c0_i32 = arith.constant 0 : i32
    %c0_i32_0 = arith.constant 0 : i32
    return %arg0, %c0_i32 : i32, i32
  }
}

</mosaic_0001>

<llo_original>
// kernel: tpu_custom_call.1
$region0: #{tpu_custom_call.1}
  #allocation0 [shape = 'u32[]', space=smem, size = 0x4, offset = 0x4, fixed_abs, tag = 'smem constant byte address 0x4 - core index']
  #allocation1 [shape = 'u32[144,128]{1,0:T(1,128)}', space=vmem, size = 0x12000, scoped, tag = 'internal scratch']
  %s0 = inlined_call_operand.hbm [shape: f32[8,16], index: 0, kind: input, shape index: {}]
  %s1 = inlined_call_operand.hbm [shape: f32[16,32], index: 1, kind: input, shape index: {}]
  %s2 = inlined_call_operand.vmem [shape: f32[1,32], index: 2, kind: input, shape index: {}]
  %s3 = inlined_call_operand.hbm [shape: f32[32,32], index: 3, kind: input, shape index: {}]
  %s4 = inlined_call_operand.vmem [shape: f32[1,32], index: 4, kind: input, shape index: {}]
  %s5 = inlined_call_operand.hbm [shape: f32[32,128], index: 5, kind: input, shape index: {}]
  %s6 = inlined_call_operand.vmem [shape: f32[1,128], index: 6, kind: input, shape index: {}]
  %s7 = inlined_call_operand.hbm [shape: f32[8,128], index: 7, kind: output, shape index: {}]
  %s8 = sld [smem:[#allocation0]]
  $region54: #{tpu_custom_call.1} parent=0
    _
  %s10 = ssub.s32 1, %s8
  %s11 = scalar_select 0, %s10, %s8
  $region1: #{tpu_custom_call.1} parent=0
    #allocation2 [shape = 'u8[4096]{0}', space=vmem, size = 0x1000, scoped, tag = 'input window, operand 0, single buffered']
    #allocation3 [shape = 's32[1]{0}', space=sflag, size = 0x4, scoped, tag = 'scoped memory for tpu_custom_call.1']
    #allocation4 [shape = 's32[1]{0}', space=sflag, size = 0x4, scoped, tag = 'scoped memory for tpu_custom_call.1']
    #allocation5 [shape = 'u8[8192]{0}', space=vmem, size = 0x2000, scoped, tag = 'input window, operand 1, single buffered']
    #allocation6 [shape = 's32[1]{0}', space=sflag, size = 0x4, scoped, tag = 'scoped memory for tpu_custom_call.1']
    #allocation7 [shape = 'u8[16384]{0}', space=vmem, size = 0x4000, scoped, tag = 'input window, operand 3, single buffered']
    #allocation8 [shape = 'u8[16384]{0}', space=vmem, size = 0x4000, scoped, tag = 'input window, operand 5, single buffered']
    #allocation9 [shape = 's32[1]{0}', space=sflag, size = 0x4, scoped, tag = 'scoped memory for tpu_custom_call.1']
    #allocation10 [shape = 'u8[4096]{0}', space=vmem, size = 0x1000, scoped, tag = 'output window, operand 0, single buffered']
    %12 = vsyncpa [#allocation3], 0
    %13 = vsyncpa [#allocation6], 0
    %14 = vsyncpa [#allocation9], 0
    %15 = vsyncpa [#allocation4], 0
    // Predicated region
    $region2: #{tpu_custom_call.1} parent=1 // pred_check
      _
    $region3: #{tpu_custom_call.1} parent=1 // pred_check_branch
      %17 = sbr.rel (0) target = $region5
    $region4: #{tpu_custom_call.1} parent=1 // pred_region
      %s19 = ssub.s32 128, 128
      %20 = vsyncadd [#allocation3], %s19
      %s22 = sshll.u32 [#allocation2], 4
      %s23 = int_to_ptr.vmem [resolvable:$true] %s22
      %25 = dma.hbm_to_vmem [thread:$0]  %s0, 128, %s23, [#allocation3]
    $region5: #{tpu_custom_call.1} parent=1 // pred_fallthru
      _
    // Predicated region
    $region6: #{tpu_custom_call.1} parent=1 // pred_check
      _
    $region7: #{tpu_custom_call.1} parent=1 // pred_check_branch
      %27 = sbr.rel (0) target = $region9
    $region8: #{tpu_custom_call.1} parent=1 // pred_region
      %s29 = ssub.s32 256, 256
      %30 = vsyncadd [#allocation6], %s29
      %s31 = sshll.u32 [#allocation5], 4
      %s32 = int_to_ptr.vmem [resolvable:$true] %s31
      %37 = dma.hbm_to_vmem [thread:$0]  %s1, 256, %s32, [#allocation6], 128, 128, 8
    $region9: #{tpu_custom_call.1} parent=1 // pred_fallthru
      _
    // Predicated region
    $region10: #{tpu_custom_call.1} parent=1 // pred_check
      _
    $region11: #{tpu_custom_call.1} parent=1 // pred_check_branch
      %39 = sbr.rel (0) target = $region13
    $region12: #{tpu_custom_call.1} parent=1 // pred_region
      _
    $region13: #{tpu_custom_call.1} parent=1 // pred_fallthru
      _
    // Predicated region
    $region14: #{tpu_custom_call.1} parent=1 // pred_check
      _
    $region15: #{tpu_custom_call.1} parent=1 // pred_check_branch
      %41 = sbr.rel (0) target = $region17
    $region16: #{tpu_custom_call.1} parent=1 // pred_region
      %s43 = ssub.s32 512, 512
      %44 = vsyncadd [#allocation6], %s43
      %s45 = sshll.u32 [#allocation7], 4
      %s46 = int_to_ptr.vmem [resolvable:$true] %s45
      %51 = dma.hbm_to_vmem [thread:$0]  %s3, 512, %s46, [#allocation6], 128, 128, 8
    $region17: #{tpu_custom_call.1} parent=1 // pred_fallthru
      _
    // Predicated region
    $region18: #{tpu_custom_call.1} parent=1 // pred_check
      _
    $region19: #{tpu_custom_call.1} parent=1 // pred_check_branch
      %53 = sbr.rel (0) target = $region21
    $region20: #{tpu_custom_call.1} parent=1 // pred_region
      _
    $region21: #{tpu_custom_call.1} parent=1 // pred_fallthru
      _
    // Predicated region
    $region22: #{tpu_custom_call.1} parent=1 // pred_check
      _
    $region23: #{tpu_custom_call.1} parent=1 // pred_check_branch
      %55 = sbr.rel (0) target = $region25
    $region24: #{tpu_custom_call.1} parent=1 // pred_region
      %s57 = ssub.s32 512, 512
      %58 = vsyncadd [#allocation9], %s57
      %s59 = sshll.u32 [#allocation8], 4
      %s60 = int_to_ptr.vmem [resolvable:$true] %s59
      %65 = dma.hbm_to_vmem [thread:$0]  %s5, 512, %s60, [#allocation9], 128, 128, 8
    $region25: #{tpu_custom_call.1} parent=1 // pred_fallthru
      _
    // Predicated region
    $region26: #{tpu_custom_call.1} parent=1 // pred_check
      _
    $region27: #{tpu_custom_call.1} parent=1 // pred_check_branch
      %67 = sbr.rel (0) target = $region29
    $region28: #{tpu_custom_call.1} parent=1 // pred_region
      _
    $region29: #{tpu_custom_call.1} parent=1 // pred_fallthru
      _
    // Predicated region
    $region30: #{tpu_custom_call.1} parent=1 // pred_check
      _
    $region31: #{tpu_custom_call.1} parent=1 // pred_check_branch
      %69 = sbr.rel (0) target = $region33
    $region32: #{tpu_custom_call.1} parent=1 // pred_region
      %70 = dma.done [#allocation3], 128
    $region33: #{tpu_custom_call.1} parent=1 // pred_fallthru
      _
    // Predicated region
    $region34: #{tpu_custom_call.1} parent=1 // pred_check
      _
    $region35: #{tpu_custom_call.1} parent=1 // pred_check_branch
      %72 = sbr.rel (0) target = $region37
    $region36: #{tpu_custom_call.1} parent=1 // pred_region
      %73 = dma.done [#allocation6], 256
    $region37: #{tpu_custom_call.1} parent=1 // pred_fallthru
      _
    // Predicated region
    $region38: #{tpu_custom_call.1} parent=1 // pred_check
      _
    $region39: #{tpu_custom_call.1} parent=1 // pred_check_branch
      %75 = sbr.rel (0) target = $region41
    $region40: #{tpu_custom_call.1} parent=1 // pred_region
      %76 = dma.done [#allocation6], 512
    $region41: #{tpu_custom_call.1} parent=1 // pred_fallthru
      _
    // Predicated region
    $region42: #{tpu_custom_call.1} parent=1 // pred_check
      _
    $region43: #{tpu_custom_call.1} parent=1 // pred_check_branch
      %78 = sbr.rel (0) target = $region45
    $region44: #{tpu_custom_call.1} parent=1 // pred_region
      %79 = dma.done [#allocation9], 512
    $region45: #{tpu_custom_call.1} parent=1 // pred_fallthru
      _
    %v80 = vld [vmem:[#allocation2] sm:$0xff]
    %v81 = vld [vmem:[#allocation5] sm:$0xff]
    %v82 = vld [vmem:[#allocation5 + $0x8] sm:$0xff]
    %v83 = vld [vmem:[%s2] sm:$0x1]
    %v85 = vlaneseq
    %v86 = vshrl.u32 %v85, 7
    %v87 = vsub.s32 0, %v86
    %v88 = vrot.slane %v83, %v87
    %vm90 = vcmask 130048
    %v92 = vsel %vm90, %v80, 0
    %94 = vmatprep.subr.mxu0 0.0
    %95 = vmatpush1.msra.mxu0 %v81
    %96 = vmatprep.subr.mxu0 0.0
    %97 = vmatpush1.msra.mxu0 %v82
    %98 = vmatprep.subr.mxu0 0.0
    %99 = vmatpush1.msra.mxu0 0.0
    %100 = vmatprep.subr.mxu0 0.0
    %101 = vmatpush1.msra.mxu0 0.0
    %102 = vmatprep.subr.mxu0 0.0
    %103 = vmatpush1.msra.mxu0 0.0
    %104 = vmatprep.subr.mxu0 0.0
    %105 = vmatpush1.msra.mxu0 0.0
    %106 = vmatprep.subr.mxu0 0.0
    %107 = vmatpush1.msra.mxu0 0.0
    %108 = vmatprep.subr.mxu0 0.0
    %109 = vmatpush1.msra.mxu0 0.0
    %110 = vmatprep.subr.mxu0 0.0
    %111 = vmatpush1.msra.mxu0 0.0
    %112 = vmatprep.subr.mxu0 0.0
    %113 = vmatpush1.msra.mxu0 0.0
    %114 = vmatprep.subr.mxu0 0.0
    %115 = vmatpush1.msra.mxu0 0.0
    %116 = vmatprep.subr.mxu0 0.0
    %117 = vmatpush1.msra.mxu0 0.0
    %118 = vmatprep.subr.mxu0 0.0
    %119 = vmatpush1.msra.mxu0 0.0
    %120 = vmatprep.subr.mxu0 0.0
    %121 = vmatpush1.msra.mxu0 0.0
    %122 = vmatprep.subr.mxu0 0.0
    %123 = vmatpush1.msra.mxu0 0.0
    %124 = vmatprep.subr.mxu0 0.0
    %125 = vmatpush1.msra.mxu0 0.0
    %126 = vmatprep.subr.mxu0 0.0
    %127 = vmatpush1.msra.mxu0 0.0
    %128 = vmatprep.subr.mxu0 0.0
    %129 = vmatpush1.msra.mxu0 0.0
    %130 = vmatprep.subr.mxu0 0.0
    %131 = vmatpush1.msra.mxu0 0.0
    %132 = vmatprep.subr.mxu0 0.0
    %133 = vmatpush1.msra.mxu0 0.0
    %134 = vmatprep.subr.mxu0 0.0
    %135 = vmatpush1.msra.mxu0 0.0
    %136 = vmatprep.subr.mxu0 0.0
    %137 = vmatpush1.msra.mxu0 0.0
    %138 = vmatprep.subr.mxu0 0.0
    %139 = vmatpush1.msra.mxu0 0.0
    %140 = vmatprep.subr.mxu0 0.0
    %141 = vmatpush1.msra.mxu0 0.0
    %142 = vmatprep.subr.mxu0 0.0
    %143 = vmatpush1.msra.mxu0 0.0
    %144 = vmatprep.subr.mxu0 0.0
    %145 = vmatpush1.msra.mxu0 0.0
    %146 = vmatprep.subr.mxu0 0.0
    %147 = vmatpush1.msra.mxu0 0.0
    %148 = vmatprep.subr.mxu0 0.0
    %149 = vmatpush1.msra.mxu0 0.0
    %150 = vmatprep.subr.mxu0 0.0
    %151 = vmatpush1.msra.mxu0 0.0
    %152 = vmatprep.subr.mxu0 0.0
    %153 = vmatpush1.msra.mxu0 0.0
    %154 = vmatprep.subr.mxu0 0.0
    %155 = vmatpush1.msra.mxu0 0.0
    %156 = vmatprep.subr.mxu0 0.0
    %157 = vmatpush1.msra.mxu0 0.0
    %158 = vmatprep.mubr.f32.mxu0 0.0
    %159 = vmatmul.mubr.f32.gmra.mrb[0].mxu0 %v92
    %v160 = vpop.f32.mrb[0].mxu0
    %v161 = vadd.f32 %v88, %v160
    %v162 = vpop.f32.mrb[0].mxu0
    %163 = vdwg.mxu0
    %v164 = vmax.f32 %v161, 0.0
    %v165 = vld [vmem:[#allocation7] sm:$0xff]
    %v166 = vld [vmem:[#allocation7 + $0x8] sm:$0xff]
    %v167 = vld [vmem:[#allocation7 + $0x10] sm:$0xff]
    %v168 = vld [vmem:[#allocation7 + $0x18] sm:$0xff]
    %v169 = vld [vmem:[%s4] sm:$0x1]
    %v171 = vlaneseq
    %v172 = vshrl.u32 %v171, 7
    %v173 = vsub.s32 0, %v172
    %v174 = vrot.slane %v169, %v173
    %vm176 = vcmask 261120
    %v178 = vsel %vm176, %v164, 0
    %180 = vmatprep.subr.mxu0 0.0
    %181 = vmatpush1.msra.mxu0 %v165
    %182 = vmatprep.subr.mxu0 0.0
    %183 = vmatpush1.msra.mxu0 %v166
    %184 = vmatprep.subr.mxu0 0.0
    %185 = vmatpush1.msra.mxu0 %v167
    %186 = vmatprep.subr.mxu0 0.0
    %187 = vmatpush1.msra.mxu0 %v168
    %188 = vmatprep.subr.mxu0 0.0
    %189 = vmatpush1.msra.mxu0 0.0
    %190 = vmatprep.subr.mxu0 0.0
    %191 = vmatpush1.msra.mxu0 0.0
    %192 = vmatprep.subr.mxu0 0.0
    %193 = vmatpush1.msra.mxu0 0.0
    %194 = vmatprep.subr.mxu0 0.0
    %195 = vmatpush1.msra.mxu0 0.0
    %196 = vmatprep.subr.mxu0 0.0
    %197 = vmatpush1.msra.mxu0 0.0
    %198 = vmatprep.subr.mxu0 0.0
    %199 = vmatpush1.msra.mxu0 0.0
    %200 = vmatprep.subr.mxu0 0.0
    %201 = vmatpush1.msra.mxu0 0.0
    %202 = vmatprep.subr.mxu0 0.0
    %203 = vmatpush1.msra.mxu0 0.0
    %204 = vmatprep.subr.mxu0 0.0
    %205 = vmatpush1.msra.mxu0 0.0
    %206 = vmatprep.subr.mxu0 0.0
    %207 = vmatpush1.msra.mxu0 0.0
    %208 = vmatprep.subr.mxu0 0.0
    %209 = vmatpush1.msra.mxu0 0.0
    %210 = vmatprep.subr.mxu0 0.0
    %211 = vmatpush1.msra.mxu0 0.0
    %212 = vmatprep.subr.mxu0 0.0
    %213 = vmatpush1.msra.mxu0 0.0
    %214 = vmatprep.subr.mxu0 0.0
    %215 = vmatpush1.msra.mxu0 0.0
    %216 = vmatprep.subr.mxu0 0.0
    %217 = vmatpush1.msra.mxu0 0.0
    %218 = vmatprep.subr.mxu0 0.0
    %219 = vmatpush1.msra.mxu0 0.0
    %220 = vmatprep.subr.mxu0 0.0
    %221 = vmatpush1.msra.mxu0 0.0
    %222 = vmatprep.subr.mxu0 0.0
    %223 = vmatpush1.msra.mxu0 0.0
    %224 = vmatprep.subr.mxu0 0.0
    %225 = vmatpush1.msra.mxu0 0.0
    %226 = vmatprep.subr.mxu0 0.0
    %227 = vmatpush1.msra.mxu0 0.0
    %228 = vmatprep.subr.mxu0 0.0
    %229 = vmatpush1.msra.mxu0 0.0
    %230 = vmatprep.subr.mxu0 0.0
    %231 = vmatpush1.msra.mxu0 0.0
    %232 = vmatprep.subr.mxu0 0.0
    %233 = vmatpush1.msra.mxu0 0.0
    %234 = vmatprep.subr.mxu0 0.0
    %235 = vmatpush1.msra.mxu0 0.0
    %236 = vmatprep.subr.mxu0 0.0
    %237 = vmatpush1.msra.mxu0 0.0
    %238 = vmatprep.subr.mxu0 0.0
    %239 = vmatpush1.msra.mxu0 0.0
    %240 = vmatprep.subr.mxu0 0.0
    %241 = vmatpush1.msra.mxu0 0.0
    %242 = vmatprep.subr.mxu0 0.0
    %243 = vmatpush1.msra.mxu0 0.0
    %244 = vmatprep.mubr.f32.mxu0 0.0
    %245 = vmatmul.mubr.f32.gmra.mrb[0].mxu0 %v178
    %v246 = vpop.f32.mrb[0].mxu0
    %v247 = vadd.f32 %v174, %v246
    %v248 = vpop.f32.mrb[0].mxu0
    %249 = vdwg.mxu0
    %v250 = vmax.f32 %v247, 0.0
    %v251 = vld [vmem:[#allocation8] sm:$0xff]
    %v252 = vld [vmem:[#allocation8 + $0x8] sm:$0xff]
    %v253 = vld [vmem:[#allocation8 + $0x10] sm:$0xff]
    %v254 = vld [vmem:[#allocation8 + $0x18] sm:$0xff]
    %v255 = vld [vmem:[%s6] sm:$0x1]
    %v257 = vlaneseq
    %v258 = vshrl.u32 %v257, 7
    %v259 = vsub.s32 0, %v258
    %v260 = vrot.slane %v255, %v259
    %v263 = vsel %vm176, %v250, 0
    %265 = vmatprep.subr.mxu0 0.0
    %266 = vmatpush1.msra.mxu0 %v251
    %267 = vmatprep.subr.mxu0 0.0
    %268 = vmatpush1.msra.mxu0 %v252
    %269 = vmatprep.subr.mxu0 0.0
    %270 = vmatpush1.msra.mxu0 %v253
    %271 = vmatprep.subr.mxu0 0.0
    %272 = vmatpush1.msra.mxu0 %v254
    %273 = vmatprep.subr.mxu0 0.0
    %274 = vmatpush1.msra.mxu0 0.0
    %275 = vmatprep.subr.mxu0 0.0
    %276 = vmatpush1.msra.mxu0 0.0
    %277 = vmatprep.subr.mxu0 0.0
    %278 = vmatpush1.msra.mxu0 0.0
    %279 = vmatprep.subr.mxu0 0.0
    %280 = vmatpush1.msra.mxu0 0.0
    %281 = vmatprep.subr.mxu0 0.0
    %282 = vmatpush1.msra.mxu0 0.0
    %283 = vmatprep.subr.mxu0 0.0
    %284 = vmatpush1.msra.mxu0 0.0
    %285 = vmatprep.subr.mxu0 0.0
    %286 = vmatpush1.msra.mxu0 0.0
    %287 = vmatprep.subr.mxu0 0.0
    %288 = vmatpush1.msra.mxu0 0.0
    %289 = vmatprep.subr.mxu0 0.0
    %290 = vmatpush1.msra.mxu0 0.0
    %291 = vmatprep.subr.mxu0 0.0
    %292 = vmatpush1.msra.mxu0 0.0
    %293 = vmatprep.subr.mxu0 0.0
    %294 = vmatpush1.msra.mxu0 0.0
    %295 = vmatprep.subr.mxu0 0.0
    %296 = vmatpush1.msra.mxu0 0.0
    %297 = vmatprep.subr.mxu0 0.0
    %298 = vmatpush1.msra.mxu0 0.0
    %299 = vmatprep.subr.mxu0 0.0
    %300 = vmatpush1.msra.mxu0 0.0
    %301 = vmatprep.subr.mxu0 0.0
    %302 = vmatpush1.msra.mxu0 0.0
    %303 = vmatprep.subr.mxu0 0.0
    %304 = vmatpush1.msra.mxu0 0.0
    %305 = vmatprep.subr.mxu0 0.0
    %306 = vmatpush1.msra.mxu0 0.0
    %307 = vmatprep.subr.mxu0 0.0
    %308 = vmatpush1.msra.mxu0 0.0
    %309 = vmatprep.subr.mxu0 0.0
    %310 = vmatpush1.msra.mxu0 0.0
    %311 = vmatprep.subr.mxu0 0.0
    %312 = vmatpush1.msra.mxu0 0.0
    %313 = vmatprep.subr.mxu0 0.0
    %314 = vmatpush1.msra.mxu0 0.0
    %315 = vmatprep.subr.mxu0 0.0
    %316 = vmatpush1.msra.mxu0 0.0
    %317 = vmatprep.subr.mxu0 0.0
    %318 = vmatpush1.msra.mxu0 0.0
    %319 = vmatprep.subr.mxu0 0.0
    %320 = vmatpush1.msra.mxu0 0.0
    %321 = vmatprep.subr.mxu0 0.0
    %322 = vmatpush1.msra.mxu0 0.0
    %323 = vmatprep.subr.mxu0 0.0
    %324 = vmatpush1.msra.mxu0 0.0
    %325 = vmatprep.subr.mxu0 0.0
    %326 = vmatpush1.msra.mxu0 0.0
    %327 = vmatprep.subr.mxu0 0.0
    %328 = vmatpush1.msra.mxu0 0.0
    %329 = vmatprep.mubr.f32.mxu0 0.0
    %330 = vmatmul.mubr.f32.gmra.mrb[0].mxu0 %v263
    %v331 = vpop.f32.mrb[0].mxu0
    %v332 = vadd.f32 %v260, %v331
    %v333 = vpop.f32.mrb[0].mxu0
    %334 = vdwg.mxu0
    %v335 = vlaneseq
    %v336 = vand.u32 %v335, 127
    %v337 = vmax.f32 %v332, -9.0
    %v338 = vmin.f32 %v337, 9.0
    %v339 = vtanh.pop %v338
    %v340 = vmax.f32 %v332, 0.007
    %v341 = vmin.f32 %v340, 7.5
    %v342 = vmul.f32 %v341, 1.442695
    %v343 = vpow.pop %v342
    %vm344 = vcmp.lt.s32.totalorder %v336, 8
    %vm345 = vcmp.lt.s32.totalorder %v336, 16
    %v346 = vsel %vm345, %v343, %v332
    %v347 = vsel %vm344, %v339, %v346
    %348 = vst [vmem:[#allocation10] sm:$0xff] %v347
    // Predicated region
    $region46: #{tpu_custom_call.1} parent=1 // pred_check
      _
    $region47: #{tpu_custom_call.1} parent=1 // pred_check_branch
      %350 = sbr.rel (0) target = $region49
    $region48: #{tpu_custom_call.1} parent=1 // pred_region
      %s352 = ssub.s32 128, 128
      %353 = vsyncadd [#allocation4], %s352
      %s355 = sshll.u32 [#allocation10], 4
      %s356 = int_to_ptr.vmem [resolvable:$true] %s355
      %358 = dma.vmem_to_hbm [thread:$0]  %s356, 128, %s7, [#allocation4]
    $region49: #{tpu_custom_call.1} parent=1 // pred_fallthru
      _
    // Predicated region
    $region50: #{tpu_custom_call.1} parent=1 // pred_check
      _
    $region51: #{tpu_custom_call.1} parent=1 // pred_check_branch
      %360 = sbr.rel (0) target = $region53
    $region52: #{tpu_custom_call.1} parent=1 // pred_region
      %361 = dma.done [#allocation4], 128
    $region53: #{tpu_custom_call.1} parent=1 // pred_fallthru
      _
    %362 = vsyncpa [#allocation3], 1
    %363 = vsyncpa [#allocation6], 1
    %364 = vsyncpa [#allocation9], 1
    %365 = vsyncpa [#allocation4], 1

// kernel: tpu_custom_call.1
$region0: #{tpu_custom_call.1}
  #allocation0 [shape = 'u32[]', space=smem, size = 0x4, offset = 0x4, fixed_abs, tag = 'smem constant byte address 0x4 - core index']
  #allocation1 [shape = 'u32[144,128]{1,0:T(1,128)}', space=vmem, size = 0x12000, scoped, tag = 'internal scratch']
  %s0 = inlined_call_operand.hbm [shape: f32[8,16], index: 0, kind: input, shape index: {}]
  %s1 = inlined_call_operand.hbm [shape: f32[16,32], index: 1, kind: input, shape index: {}]
  %s2 = inlined_call_operand.vmem [shape: f32[1,32], index: 2, kind: input, shape index: {}]
  %s3 = inlined_call_operand.hbm [shape: f32[32,32], index: 3, kind: input, shape index: {}]
  %s4 = inlined_call_operand.vmem [shape: f32[1,32], index: 4, kind: input, shape index: {}]
  %s5 = inlined_call_operand.hbm [shape: f32[32,128], index: 5, kind: input, shape index: {}]
  %s6 = inlined_call_operand.vmem [shape: f32[1,128], index: 6, kind: input, shape index: {}]
  %s7 = inlined_call_operand.hbm [shape: f32[8,128], index: 7, kind: output, shape index: {}]
  %s8 = sld [smem:[#allocation0]]
  $region54: #{tpu_custom_call.1} parent=0
    _
  %s10 = ssub.s32 1, %s8
  %s11 = scalar_select 0, %s10, %s8
  $region1: #{tpu_custom_call.1} parent=0
    #allocation2 [shape = 'u8[4096]{0}', space=vmem, size = 0x1000, scoped, tag = 'input window, operand 0, single buffered']
    #allocation3 [shape = 's32[1]{0}', space=sflag, size = 0x4, scoped, tag = 'scoped memory for tpu_custom_call.1']
    #allocation4 [shape = 's32[1]{0}', space=sflag, size = 0x4, scoped, tag = 'scoped memory for tpu_custom_call.1']
    #allocation5 [shape = 'u8[8192]{0}', space=vmem, size = 0x2000, scoped, tag = 'input window, operand 1, single buffered']
    #allocation6 [shape = 's32[1]{0}', space=sflag, size = 0x4, scoped, tag = 'scoped memory for tpu_custom_call.1']
    #allocation7 [shape = 'u8[16384]{0}', space=vmem, size = 0x4000, scoped, tag = 'input window, operand 3, single buffered']
    #allocation8 [shape = 'u8[16384]{0}', space=vmem, size = 0x4000, scoped, tag = 'input window, operand 5, single buffered']
    #allocation9 [shape = 's32[1]{0}', space=sflag, size = 0x4, scoped, tag = 'scoped memory for tpu_custom_call.1']
    #allocation10 [shape = 'u8[4096]{0}', space=vmem, size = 0x1000, scoped, tag = 'output window, operand 0, single buffered']
    %12 = vsyncpa [#allocation3], 0
    %13 = vsyncpa [#allocation6], 0
    %14 = vsyncpa [#allocation9], 0
    %15 = vsyncpa [#allocation4], 0
    // Predicated region
    $region2: #{tpu_custom_call.1} parent=1 // pred_check
      _
    $region3: #{tpu_custom_call.1} parent=1 // pred_check_branch
      %17 = sbr.rel (0) target = $region5
    $region4: #{tpu_custom_call.1} parent=1 // pred_region
      %s19 = ssub.s32 128, 128
      %20 = vsyncadd [#allocation3], %s19
      %s22 = sshll.u32 [#allocation2], 4
      %s23 = int_to_ptr.vmem [resolvable:$true] %s22
      %25 = dma.hbm_to_vmem [thread:$0]  %s0, 128, %s23, [#allocation3]
    $region5: #{tpu_custom_call.1} parent=1 // pred_fallthru
      _
    // Predicated region
    $region6: #{tpu_custom_call.1} parent=1 // pred_check
      _
    $region7: #{tpu_custom_call.1} parent=1 // pred_check_branch
      %27 = sbr.rel (0) target = $region9
    $region8: #{tpu_custom_call.1} parent=1 // pred_region
      %s29 = ssub.s32 256, 256
      %30 = vsyncadd [#allocation6], %s29
      %s31 = sshll.u32 [#allocation5], 4
      %s32 = int_to_ptr.vmem [resolvable:$true] %s31
      %37 = dma.hbm_to_vmem [thread:$0]  %s1, 256, %s32, [#allocation6], 128, 128, 8
    $region9: #{tpu_custom_call.1} parent=1 // pred_fallthru
      _
    // Predicated region
    $region10: #{tpu_custom_call.1} parent=1 // pred_check
      _
    $region11: #{tpu_custom_call.1} parent=1 // pred_check_branch
      %39 = sbr.rel (0) target = $region13
    $region12: #{tpu_custom_call.1} parent=1 // pred_region
      _
    $region13: #{tpu_custom_call.1} parent=1 // pred_fallthru
      _
    // Predicated region
    $region14: #{tpu_custom_call.1} parent=1 // pred_check
      _
    $region15: #{tpu_custom_call.1} parent=1 // pred_check_branch
      %41 = sbr.rel (0) target = $region17
    $region16: #{tpu_custom_call.1} parent=1 // pred_region
      %s43 = ssub.s32 512, 512
      %44 = vsyncadd [#allocation6], %s43
      %s45 = sshll.u32 [#allocation7], 4
      %s46 = int_to_ptr.vmem [resolvable:$true] %s45
      %51 = dma.hbm_to_vmem [thread:$0]  %s3, 512, %s46, [#allocation6], 128, 128, 8
    $region17: #{tpu_custom_call.1} parent=1 // pred_fallthru
      _
    // Predicated region
    $region18: #{tpu_custom_call.1} parent=1 // pred_check
      _
    $region19: #{tpu_custom_call.1} parent=1 // pred_check_branch
      %53 = sbr.rel (0) target = $region21
    $region20: #{tpu_custom_call.1} parent=1 // pred_region
      _
    $region21: #{tpu_custom_call.1} parent=1 // pred_fallthru
      _
    // Predicated region
    $region22: #{tpu_custom_call.1} parent=1 // pred_check
      _
    $region23: #{tpu_custom_call.1} parent=1 // pred_check_branch
      %55 = sbr.rel (0) target = $region25
    $region24: #{tpu_custom_call.1} parent=1 // pred_region
      %s57 = ssub.s32 512, 512
      %58 = vsyncadd [#allocation9], %s57
      %s59 = sshll.u32 [#allocation8], 4
      %s60 = int_to_ptr.vmem [resolvable:$true] %s59
      %65 = dma.hbm_to_vmem [thread:$0]  %s5, 512, %s60, [#allocation9], 128, 128, 8
    $region25: #{tpu_custom_call.1} parent=1 // pred_fallthru
      _
    // Predicated region
    $region26: #{tpu_custom_call.1} parent=1 // pred_check
      _
    $region27: #{tpu_custom_call.1} parent=1 // pred_check_branch
      %67 = sbr.rel (0) target = $region29
    $region28: #{tpu_custom_call.1} parent=1 // pred_region
      _
    $region29: #{tpu_custom_call.1} parent=1 // pred_fallthru
      _
    // Predicated region
    $region30: #{tpu_custom_call.1} parent=1 // pred_check
      _
    $region31: #{tpu_custom_call.1} parent=1 // pred_check_branch
      %69 = sbr.rel (0) target = $region33
    $region32: #{tpu_custom_call.1} parent=1 // pred_region
      %70 = dma.done [#allocation3], 128
    $region33: #{tpu_custom_call.1} parent=1 // pred_fallthru
      _
    // Predicated region
    $region34: #{tpu_custom_call.1} parent=1 // pred_check
      _
    $region35: #{tpu_custom_call.1} parent=1 // pred_check_branch
      %72 = sbr.rel (0) target = $region37
    $region36: #{tpu_custom_call.1} parent=1 // pred_region
      %73 = dma.done [#allocation6], 256
    $region37: #{tpu_custom_call.1} parent=1 // pred_fallthru
      _
    // Predicated region
    $region38: #{tpu_custom_call.1} parent=1 // pred_check
      _
    $region39: #{tpu_custom_call.1} parent=1 // pred_check_branch
      %75 = sbr.rel (0) target = $region41
    $region40: #{tpu_custom_call.1} parent=1 // pred_region
      %76 = dma.done [#allocation6], 512
    $region41: #{tpu_custom_call.1} parent=1 // pred_fallthru
      _
    // Predicated region
    $region42: #{tpu_custom_call.1} parent=1 // pred_check
      _
    $region43: #{tpu_custom_call.1} parent=1 // pred_check_branch
      %78 = sbr.rel (0) target = $region45
    $region44: #{tpu_custom_call.1} parent=1 // pred_region
      %79 = dma.done [#allocation9], 512
    $region45: #{tpu_custom_call.1} parent=1 // pred_fallthru
      _
    %v80 = vld [vmem:[#allocation2] sm:$0xff]
    %v81 = vld [vmem:[#allocation5] sm:$0xff]
    %v82 = vld [vmem:[#allocation5 + $0x8] sm:$0xff]
    %v83 = vld [vmem:[%s2] sm:$0x1]
    %v85 = vlaneseq
    %v86 = vshrl.u32 %v85, 7
    %v87 = vsub.s32 0, %v86
    %v88 = vrot.slane %v83, %v87
    %vm90 = vcmask 130048
    %v92 = vsel %vm90, %v80, 0
    %94 = vmatprep.subr.mxu0 0.0
    %95 = vmatpush1.msra.mxu0 %v81
    %96 = vmatprep.subr.mxu0 0.0
    %97 = vmatpush1.msra.mxu0 %v82
    %98 = vmatprep.subr.mxu0 0.0
    %99 = vmatpush1.msra.mxu0 0.0
    %100 = vmatprep.subr.mxu0 0.0
    %101 = vmatpush1.msra.mxu0 0.0
    %102 = vmatprep.subr.mxu0 0.0
    %103 = vmatpush1.msra.mxu0 0.0
    %104 = vmatprep.subr.mxu0 0.0
    %105 = vmatpush1.msra.mxu0 0.0
    %106 = vmatprep.subr.mxu0 0.0
    %107 = vmatpush1.msra.mxu0 0.0
    %108 = vmatprep.subr.mxu0 0.0
    %109 = vmatpush1.msra.mxu0 0.0
    %110 = vmatprep.subr.mxu0 0.0
    %111 = vmatpush1.msra.mxu0 0.0
    %112 = vmatprep.subr.mxu0 0.0
    %113 = vmatpush1.msra.mxu0 0.0
    %114 = vmatprep.subr.mxu0 0.0
    %115 = vmatpush1.msra.mxu0 0.0
    %116 = vmatprep.subr.mxu0 0.0
    %117 = vmatpush1.msra.mxu0 0.0
    %118 = vmatprep.subr.mxu0 0.0
    %119 = vmatpush1.msra.mxu0 0.0
    %120 = vmatprep.subr.mxu0 0.0
    %121 = vmatpush1.msra.mxu0 0.0
    %122 = vmatprep.subr.mxu0 0.0
    %123 = vmatpush1.msra.mxu0 0.0
    %124 = vmatprep.subr.mxu0 0.0
    %125 = vmatpush1.msra.mxu0 0.0
    %126 = vmatprep.subr.mxu0 0.0
    %127 = vmatpush1.msra.mxu0 0.0
    %128 = vmatprep.subr.mxu0 0.0
    %129 = vmatpush1.msra.mxu0 0.0
    %130 = vmatprep.subr.mxu0 0.0
    %131 = vmatpush1.msra.mxu0 0.0
    %132 = vmatprep.subr.mxu0 0.0
    %133 = vmatpush1.msra.mxu0 0.0
    %134 = vmatprep.subr.mxu0 0.0
    %135 = vmatpush1.msra.mxu0 0.0
    %136 = vmatprep.subr.mxu0 0.0
    %137 = vmatpush1.msra.mxu0 0.0
    %138 = vmatprep.subr.mxu0 0.0
    %139 = vmatpush1.msra.mxu0 0.0
    %140 = vmatprep.subr.mxu0 0.0
    %141 = vmatpush1.msra.mxu0 0.0
    %142 = vmatprep.subr.mxu0 0.0
    %143 = vmatpush1.msra.mxu0 0.0
    %144 = vmatprep.subr.mxu0 0.0
    %145 = vmatpush1.msra.mxu0 0.0
    %146 = vmatprep.subr.mxu0 0.0
    %147 = vmatpush1.msra.mxu0 0.0
    %148 = vmatprep.subr.mxu0 0.0
    %149 = vmatpush1.msra.mxu0 0.0
    %150 = vmatprep.subr.mxu0 0.0
    %151 = vmatpush1.msra.mxu0 0.0
    %152 = vmatprep.subr.mxu0 0.0
    %153 = vmatpush1.msra.mxu0 0.0
    %154 = vmatprep.subr.mxu0 0.0
    %155 = vmatpush1.msra.mxu0 0.0
    %156 = vmatprep.subr.mxu0 0.0
    %157 = vmatpush1.msra.mxu0 0.0
    %158 = vmatprep.mubr.f32.mxu0 0.0
    %159 = vmatmul.mubr.f32.gmra.mrb[0].mxu0 %v92
    %v160 = vpop.f32.mrb[0].mxu0
    %v161 = vadd.f32 %v88, %v160
    %v162 = vpop.f32.mrb[0].mxu0
    %163 = vdwg.mxu0
    %v164 = vmax.f32 %v161, 0.0
    %v165 = vld [vmem:[#allocation7] sm:$0xff]
    %v166 = vld [vmem:[#allocation7 + $0x8] sm:$0xff]
    %v167 = vld [vmem:[#allocation7 + $0x10] sm:$0xff]
    %v168 = vld [vmem:[#allocation7 + $0x18] sm:$0xff]
    %v169 = vld [vmem:[%s4] sm:$0x1]
    %v171 = vlaneseq
    %v172 = vshrl.u32 %v171, 7
    %v173 = vsub.s32 0, %v172
    %v174 = vrot.slane %v169, %v173
    %vm176 = vcmask 261120
    %v178 = vsel %vm176, %v164, 0
    %180 = vmatprep.subr.mxu0 0.0
    %181 = vmatpush1.msra.mxu0 %v165
    %182 = vmatprep.subr.mxu0 0.0
    %183 = vmatpush1.msra.mxu0 %v166
    %184 = vmatprep.subr.mxu0 0.0
    %185 = vmatpush1.msra.mxu0 %v167
    %186 = vmatprep.subr.mxu0 0.0
    %187 = vmatpush1.msra.mxu0 %v168
    %188 = vmatprep.subr.mxu0 0.0
    %189 = vmatpush1.msra.mxu0 0.0
    %190 = vmatprep.subr.mxu0 0.0
    %191 = vmatpush1.msra.mxu0 0.0
    %192 = vmatprep.subr.mxu0 0.0
    %193 = vmatpush1.msra.mxu0 0.0
    %194 = vmatprep.subr.mxu0 0.0
    %195 = vmatpush1.msra.mxu0 0.0
    %196 = vmatprep.subr.mxu0 0.0
    %197 = vmatpush1.msra.mxu0 0.0
    %198 = vmatprep.subr.mxu0 0.0
    %199 = vmatpush1.msra.mxu0 0.0
    %200 = vmatprep.subr.mxu0 0.0
    %201 = vmatpush1.msra.mxu0 0.0
    %202 = vmatprep.subr.mxu0 0.0
    %203 = vmatpush1.msra.mxu0 0.0
    %204 = vmatprep.subr.mxu0 0.0
    %205 = vmatpush1.msra.mxu0 0.0
    %206 = vmatprep.subr.mxu0 0.0
    %207 = vmatpush1.msra.mxu0 0.0
    %208 = vmatprep.subr.mxu0 0.0
    %209 = vmatpush1.msra.mxu0 0.0
    %210 = vmatprep.subr.mxu0 0.0
    %211 = vmatpush1.msra.mxu0 0.0
    %212 = vmatprep.subr.mxu0 0.0
    %213 = vmatpush1.msra.mxu0 0.0
    %214 = vmatprep.subr.mxu0 0.0
    %215 = vmatpush1.msra.mxu0 0.0
    %216 = vmatprep.subr.mxu0 0.0
    %217 = vmatpush1.msra.mxu0 0.0
    %218 = vmatprep.subr.mxu0 0.0
    %219 = vmatpush1.msra.mxu0 0.0
    %220 = vmatprep.subr.mxu0 0.0
    %221 = vmatpush1.msra.mxu0 0.0
    %222 = vmatprep.subr.mxu0 0.0
    %223 = vmatpush1.msra.mxu0 0.0
    %224 = vmatprep.subr.mxu0 0.0
    %225 = vmatpush1.msra.mxu0 0.0
    %226 = vmatprep.subr.mxu0 0.0
    %227 = vmatpush1.msra.mxu0 0.0
    %228 = vmatprep.subr.mxu0 0.0
    %229 = vmatpush1.msra.mxu0 0.0
    %230 = vmatprep.subr.mxu0 0.0
    %231 = vmatpush1.msra.mxu0 0.0
    %232 = vmatprep.subr.mxu0 0.0
    %233 = vmatpush1.msra.mxu0 0.0
    %234 = vmatprep.subr.mxu0 0.0
    %235 = vmatpush1.msra.mxu0 0.0
    %236 = vmatprep.subr.mxu0 0.0
    %237 = vmatpush1.msra.mxu0 0.0
    %238 = vmatprep.subr.mxu0 0.0
    %239 = vmatpush1.msra.mxu0 0.0
    %240 = vmatprep.subr.mxu0 0.0
    %241 = vmatpush1.msra.mxu0 0.0
    %242 = vmatprep.subr.mxu0 0.0
    %243 = vmatpush1.msra.mxu0 0.0
    %244 = vmatprep.mubr.f32.mxu0 0.0
    %245 = vmatmul.mubr.f32.gmra.mrb[0].mxu0 %v178
    %v246 = vpop.f32.mrb[0].mxu0
    %v247 = vadd.f32 %v174, %v246
    %v248 = vpop.f32.mrb[0].mxu0
    %249 = vdwg.mxu0
    %v250 = vmax.f32 %v247, 0.0
    %v251 = vld [vmem:[#allocation8] sm:$0xff]
    %v252 = vld [vmem:[#allocation8 + $0x8] sm:$0xff]
    %v253 = vld [vmem:[#allocation8 + $0x10] sm:$0xff]
    %v254 = vld [vmem:[#allocation8 + $0x18] sm:$0xff]
    %v255 = vld [vmem:[%s6] sm:$0x1]
    %v257 = vlaneseq
    %v258 = vshrl.u32 %v257, 7
    %v259 = vsub.s32 0, %v258
    %v260 = vrot.slane %v255, %v259
    %v263 = vsel %vm176, %v250, 0
    %265 = vmatprep.subr.mxu0 0.0
    %266 = vmatpush1.msra.mxu0 %v251
    %267 = vmatprep.subr.mxu0 0.0
    %268 = vmatpush1.msra.mxu0 %v252
    %269 = vmatprep.subr.mxu0 0.0
    %270 = vmatpush1.msra.mxu0 %v253
    %271 = vmatprep.subr.mxu0 0.0
    %272 = vmatpush1.msra.mxu0 %v254
    %273 = vmatprep.subr.mxu0 0.0
    %274 = vmatpush1.msra.mxu0 0.0
    %275 = vmatprep.subr.mxu0 0.0
    %276 = vmatpush1.msra.mxu0 0.0
    %277 = vmatprep.subr.mxu0 0.0
    %278 = vmatpush1.msra.mxu0 0.0
    %279 = vmatprep.subr.mxu0 0.0
    %280 = vmatpush1.msra.mxu0 0.0
    %281 = vmatprep.subr.mxu0 0.0
    %282 = vmatpush1.msra.mxu0 0.0
    %283 = vmatprep.subr.mxu0 0.0
    %284 = vmatpush1.msra.mxu0 0.0
    %285 = vmatprep.subr.mxu0 0.0
    %286 = vmatpush1.msra.mxu0 0.0
    %287 = vmatprep.subr.mxu0 0.0
    %288 = vmatpush1.msra.mxu0 0.0
    %289 = vmatprep.subr.mxu0 0.0
    %290 = vmatpush1.msra.mxu0 0.0
    %291 = vmatprep.subr.mxu0 0.0
    %292 = vmatpush1.msra.mxu0 0.0
    %293 = vmatprep.subr.mxu0 0.0
    %294 = vmatpush1.msra.mxu0 0.0
    %295 = vmatprep.subr.mxu0 0.0
    %296 = vmatpush1.msra.mxu0 0.0
    %297 = vmatprep.subr.mxu0 0.0
    %298 = vmatpush1.msra.mxu0 0.0
    %299 = vmatprep.subr.mxu0 0.0
    %300 = vmatpush1.msra.mxu0 0.0
    %301 = vmatprep.subr.mxu0 0.0
    %302 = vmatpush1.msra.mxu0 0.0
    %303 = vmatprep.subr.mxu0 0.0
    %304 = vmatpush1.msra.mxu0 0.0
    %305 = vmatprep.subr.mxu0 0.0
    %306 = vmatpush1.msra.mxu0 0.0
    %307 = vmatprep.subr.mxu0 0.0
    %308 = vmatpush1.msra.mxu0 0.0
    %309 = vmatprep.subr.mxu0 0.0
    %310 = vmatpush1.msra.mxu0 0.0
    %311 = vmatprep.subr.mxu0 0.0
    %312 = vmatpush1.msra.mxu0 0.0
    %313 = vmatprep.subr.mxu0 0.0
    %314 = vmatpush1.msra.mxu0 0.0
    %315 = vmatprep.subr.mxu0 0.0
    %316 = vmatpush1.msra.mxu0 0.0
    %317 = vmatprep.subr.mxu0 0.0
    %318 = vmatpush1.msra.mxu0 0.0
    %319 = vmatprep.subr.mxu0 0.0
    %320 = vmatpush1.msra.mxu0 0.0
    %321 = vmatprep.subr.mxu0 0.0
    %322 = vmatpush1.msra.mxu0 0.0
    %323 = vmatprep.subr.mxu0 0.0
    %324 = vmatpush1.msra.mxu0 0.0
    %325 = vmatprep.subr.mxu0 0.0
    %326 = vmatpush1.msra.mxu0 0.0
    %327 = vmatprep.subr.mxu0 0.0
    %328 = vmatpush1.msra.mxu0 0.0
    %329 = vmatprep.mubr.f32.mxu0 0.0
    %330 = vmatmul.mubr.f32.gmra.mrb[0].mxu0 %v263
    %v331 = vpop.f32.mrb[0].mxu0
    %v332 = vadd.f32 %v260, %v331
    %v333 = vpop.f32.mrb[0].mxu0
    %334 = vdwg.mxu0
    %v335 = vlaneseq
    %v336 = vand.u32 %v335, 127
    %v337 = vmax.f32 %v332, -9.0
    %v338 = vmin.f32 %v337, 9.0
    %v339 = vtanh.pop %v338
    %v340 = vmax.f32 %v332, 0.007
    %v341 = vmin.f32 %v340, 7.5
    %v342 = vmul.f32 %v341, 1.442695
    %v343 = vpow.pop %v342
    %vm344 = vcmp.lt.s32.totalorder %v336, 8
    %vm345 = vcmp.lt.s32.totalorder %v336, 16
    %v346 = vsel %vm345, %v343, %v332
    %v347 = vsel %vm344, %v339, %v346
    %348 = vst [vmem:[#allocation10] sm:$0xff] %v347
    // Predicated region
    $region46: #{tpu_custom_call.1} parent=1 // pred_check
      _
    $region47: #{tpu_custom_call.1} parent=1 // pred_check_branch
      %350 = sbr.rel (0) target = $region49
    $region48: #{tpu_custom_call.1} parent=1 // pred_region
      %s352 = ssub.s32 128, 128
      %353 = vsyncadd [#allocation4], %s352
      %s355 = sshll.u32 [#allocation10], 4
      %s356 = int_to_ptr.vmem [resolvable:$true] %s355
      %358 = dma.vmem_to_hbm [thread:$0]  %s356, 128, %s7, [#allocation4]
    $region49: #{tpu_custom_call.1} parent=1 // pred_fallthru
      _
    // Predicated region
    $region50: #{tpu_custom_call.1} parent=1 // pred_check
      _
    $region51: #{tpu_custom_call.1} parent=1 // pred_check_branch
      %360 = sbr.rel (0) target = $region53
    $region52: #{tpu_custom_call.1} parent=1 // pred_region
      %361 = dma.done [#allocation4], 128
    $region53: #{tpu_custom_call.1} parent=1 // pred_fallthru
      _
    %362 = vsyncpa [#allocation3], 1
    %363 = vsyncpa [#allocation6], 1
    %364 = vsyncpa [#allocation9], 1
    %365 = vsyncpa [#allocation4], 1

</llo_original>
